<compile_context>
chip_gen: v7x
topology: tpu7x:2x2x1
jax: 0.10.0
libtpu: 0.0.40
codegen_flags: <defaults>
</compile_context>

<pallas_src>
import math

import jax
import jax.numpy as jnp
from jax.experimental import pallas as pl
from jax.experimental.pallas import tpu as pltpu

MASK_VALUE = -1000000000.0             # matches `mask_value` in the PyTorch reference
VMEM_LIMIT_BYTES = 48 * 1024 * 1024    # explicit limit; safe on v7x (64 MiB physical)
_WEIGHT_VMEM_BUDGET = 24 * 1024 * 1024
_ATTN_VMEM_BUDGET = 40 * 1024 * 1024


def _pick_tile(n, target):
    """Largest divisor of n that is <= target, preferring multiples of 128, then 8."""
    t = max(1, min(n, target))
    best8 = None
    bestany = None
    for cand in range(t, 0, -1):
        if n % cand:
            continue
        if cand % 128 == 0:
            return cand
        if best8 is None and cand % 8 == 0:
            best8 = cand
        if bestany is None:
            bestany = cand
    return best8 if best8 is not None else (bestany if bestany is not None else n)


# --------------------------- Fused linear kernel --------------------------- #

def _make_fused_linear_kernel(n_out, scales):
    def kernel(x_ref, *refs):
        w_refs = refs[:n_out]
        b_refs = refs[n_out:2 * n_out]
        o_refs = refs[2 * n_out:]
        x = x_ref[...]
        for i in range(n_out):
            y = jnp.dot(x, w_refs[i][...], preferred_element_type=jnp.float32)
            y = y + b_refs[i][...].astype(jnp.float32)
            if scales[i] != 1.0:
                y = y * jnp.float32(scales[i])
            o_refs[i][...] = y.astype(o_refs[i].dtype)
    return kernel


def _fused_linear(x2d, weights, biases, scales=None, *, row_tile_target=256):
    """y_i = (x2d @ W_i + b_i) * scale_i for all i, in ONE pallas_call.

    x is read from HBM once for all projections.  Weights stay VMEM-resident
    (constant block index) when they fit the budget, otherwise d_out is tiled.
    """
    N, d_in = x2d.shape
    n_out = len(weights)
    d_out = weights[0].shape[1]
    if scales is None:
        scales = (1.0,) * n_out
    w_item = weights[0].dtype.itemsize
    x_item = x2d.dtype.itemsize

    tm = _pick_tile(N, row_tile_target)
    if 2 * n_out * d_in * d_out * w_item <= _WEIGHT_VMEM_BUDGET:
        tn = d_out                                   # fully resident weights
    else:
        tn_target = max(128, _WEIGHT_VMEM_BUDGET // (2 * n_out * d_in * w_item))
        tn = _pick_tile(d_out, tn_target)
    # TODO(synk): pipeline_mode=pl.Buffered(1) on the weight specs would halve the
    #             resident-weight footprint further when tn == d_out.

    b2d = [b.reshape(1, d_out) for b in biases]
    grid = (N // tm, d_out // tn)

    in_specs = [pl.BlockSpec((tm, d_in), lambda i, j: (i, 0))]                    # x row tile
    in_specs += [pl.BlockSpec((d_in, tn), lambda i, j: (0, j)) for _ in range(n_out)]  # W_i
    in_specs += [pl.BlockSpec((1, tn), lambda i, j: (0, j)) for _ in range(n_out)]     # b_i
    out_specs = tuple(pl.BlockSpec((tm, tn), lambda i, j: (i, j)) for _ in range(n_out))
    out_shape = tuple(jax.ShapeDtypeStruct((N, d_out), x2d.dtype) for _ in range(n_out))

    cost = pl.CostEstimate(
        flops=int(2 * N * d_in * d_out * n_out),
        transcendentals=0,
        bytes_accessed=int(N * d_in * x_item
                           + n_out * (d_in * d_out + d_out) * w_item
                           + n_out * N * d_out * x_item))

    outs = pl.pallas_call(
        _make_fused_linear_kernel(n_out, tuple(scales)),
        out_shape=out_shape,
        grid_spec=pltpu.PrefetchScalarGridSpec(
            num_scalar_prefetch=0,
            grid=grid,
            in_specs=in_specs,
            out_specs=out_specs),
        compiler_params=pltpu.CompilerParams(
            dimension_semantics=("parallel", "parallel"),
            vmem_limit_bytes=VMEM_LIMIT_BYTES),
        cost_estimate=cost,
    )(x2d, *weights, *b2d)
    if not isinstance(outs, (list, tuple)):
        outs = (outs,)
    return tuple(outs)


# -------------------------- Fused attention kernel ------------------------- #

def _attention_tiles(Sq, Sk, d_model, itemsize, *, q_target=256, kv_target=512):
    """Pick lane-dense tiles that keep double-buffered blocks inside ~40 MiB."""
    tq = _pick_tile(Sq, q_target)
    tk = _pick_tile(Sk, kv_target)

    def vmem_bytes(tq_, tk_):
        io = (2 * tq_ + 4 * tk_ + 2 * tq_) * d_model * itemsize   # q, k, v, out (2x buffered)
        scratch = tq_ * d_model * 4 + 2 * tq_ * 128 * 4           # acc + m/l (lane padded)
        return io + scratch + 2 * tq_ * tk_                       # + int8 mask blocks

    for _ in range(8):
        if vmem_bytes(tq, tk) <= _ATTN_VMEM_BUDGET or (tq <= 128 and tk <= 128):
            break
        if tk >= tq:
            tk = _pick_tile(Sk, max(1, tk // 2))
        else:
            tq = _pick_tile(Sq, max(1, tq // 2))
    return tq, tk


def _mha_attention(q, k, v, *, h, mask=None, causal=False):
    """Flash-style multi-head attention; q/k/v/out stay in (B, S, d_model) layout.

    q must already carry the 1/sqrt(d_k) scale (folded into the Q projection).
    All heads of a (q-tile, kv-tile) pair are processed per grid step, so the
    mask block is DMA'd once per tile (not per head) and no head split/merge
    transposes are needed anywhere.
    """
    B, Sq, d_model = q.shape
    Sk = k.shape[1]
    assert d_model % h == 0
    d_k = d_model // h
    has_mask = (mask is not None) and (not causal)

    tq, tk = _attention_tiles(Sq, Sk, d_model, q.dtype.itemsize)
    n_kv = Sk // tk

    def kernel(*refs):
        if has_mask:
            q_ref, k_ref, v_ref, m_ref, o_ref, m_sc, l_sc, acc_sc = refs
        else:
            q_ref, k_ref, v_ref, o_ref, m_sc, l_sc, acc_sc = refs
            m_ref = None
        qi = pl.program_id(1)
        ki = pl.program_id(2)

        @pl.when(ki == 0)
        def _init():
            m_sc[...] = jnp.full_like(m_sc, -jnp.inf)
            l_sc[...] = jnp.zeros_like(l_sc)
            acc_sc[...] = jnp.zeros_like(acc_sc)

        def update():
            if has_mask:
                keep = m_ref[...] != 0                          # (tq, tk), shared by all heads
            elif causal:
                row = qi * tq + jax.lax.broadcasted_iota(jnp.int32, (tq, tk), 0)
                col = ki * tk + jax.lax.broadcasted_iota(jnp.int32, (tq, tk), 1)
                keep = col <= row                               # in-kernel, zero HBM traffic
            else:
                keep = None
            # TODO(synk): for very large H switch this unrolled loop to lax.fori_loop.
            for hh in range(h):
                sl = slice(hh * d_k, (hh + 1) * d_k)
                qh = q_ref[:, sl]                               # (tq, d_k), pre-scaled
                kh = k_ref[:, sl]
                vh = v_ref[:, sl]
                s = jax.lax.dot_general(qh, kh, (((1,), (1,)), ((), ())),
                                        preferred_element_type=jnp.float32)
                if keep is not None:
                    # masked_fill (not additive) so fully-masked rows reduce to a
                    # uniform average, exactly like the PyTorch reference.
                    s = jnp.where(keep, s, MASK_VALUE)
                m_prev = m_sc[:, hh:hh + 1]
                m_new = jnp.maximum(m_prev, s.max(axis=-1, keepdims=True))
                alpha = jnp.exp(m_prev - m_new)
                p = jnp.exp(s - m_new)
                l_sc[:, hh:hh + 1] = alpha * l_sc[:, hh:hh + 1] + p.sum(-1, keepdims=True)
                acc_sc[:, sl] = alpha * acc_sc[:, sl] + jnp.dot(
                    p.astype(vh.dtype), vh, preferred_element_type=jnp.float32)
                m_sc[:, hh:hh + 1] = m_new

        if causal:
            # Tiles entirely above the diagonal contribute exactly 0 (exp underflow):
            # skip their matmuls/exps (~2x fewer MXU flops for causal masks).
            pl.when(ki * tk <= qi * tq + (tq - 1))(update)
        else:
            update()

        @pl.when(ki == pl.num_programs(2) - 1)
        def _finalize():
            inv = pl.reciprocal(l_sc[...], approx=True)         # EUP slot, frees VALU
            for hh in range(h):
                sl = slice(hh * d_k, (hh + 1) * d_k)
                o_ref[:, sl] = (acc_sc[:, sl] * inv[:, hh:hh + 1]).astype(o_ref.dtype)

    in_specs = [
        pl.BlockSpec((None, tq, d_model), lambda b, qi, ki: (b, qi, 0)),   # Q
        pl.BlockSpec((None, tk, d_model), lambda b, qi, ki: (b, ki, 0)),   # K
        pl.BlockSpec((None, tk, d_model), lambda b, qi, ki: (b, ki, 0)),   # V
    ]
    inputs = [q, k, v]
    if has_mask:
        if mask.shape[0] == 1:    # broadcast masks stay (1, Sq, Sk) in HBM
            in_specs.append(pl.BlockSpec((None, tq, tk), lambda b, qi, ki: (0, qi, ki)))
        else:
            in_specs.append(pl.BlockSpec((None, tq, tk), lambda b, qi, ki: (b, qi, ki)))
        inputs.append(mask)

    item = q.dtype.itemsize
    cost = pl.CostEstimate(
        flops=int(4 * B * Sq * Sk * d_model),
        transcendentals=int(B * h * Sq * Sk),
        bytes_accessed=int(2 * B * Sq * d_model * item
                           + 2 * B * (Sq // tq) * Sk * d_model * item
                           + (B * Sq * Sk if has_mask else 0)))

    return pl.pallas_call(
        kernel,
        out_shape=jax.ShapeDtypeStruct((B, Sq, d_model), q.dtype),
        grid_spec=pltpu.PrefetchScalarGridSpec(
            num_scalar_prefetch=0,
            grid=(B, Sq // tq, n_kv),
            in_specs=in_specs,
            out_specs=pl.BlockSpec((None, tq, d_model), lambda b, qi, ki: (b, qi, 0)),
            scratch_shapes=[
                pltpu.VMEM((tq, h), jnp.float32),        # running max per head
                pltpu.VMEM((tq, h), jnp.float32),        # running denom per head
                pltpu.VMEM((tq, d_model), jnp.float32),  # f32 output accumulator
            ]),
        compiler_params=pltpu.CompilerParams(
            dimension_semantics=("parallel", "parallel", "arbitrary"),
            vmem_limit_bytes=VMEM_LIMIT_BYTES),
        cost_estimate=cost,
    )(*inputs)


# -------------------------------- Full module ------------------------------ #

def multi_headed_attention(query, key, value, params, *, h, mask=None, causal=False):
    """Forward pass of MultiHeadedAttention (eval mode: dropout = identity).

    query/key/value: (B, S, d_model).
    params: dict with wq, bq, wk, bk, wv, bv, wo, bo; weights stored (in, out)
            (transpose of the PyTorch nn.Linear (out, in) layout).
    mask: optional, broadcastable to (B, Sq, Sk); 0 entries masked out.
    causal: generate a causal mask in-kernel instead of streaming one from HBM.
    """
    B, Sq, d_model = query.shape
    Sk = key.shape[1]
    assert d_model % h == 0
    d_k = d_model // h
    scale = 1.0 / math.sqrt(d_k)

    xq = query.reshape(B * Sq, d_model)
    xk = key.reshape(B * Sk, d_model)
    xv = value.reshape(B * Sk, d_model)

    # Q/K/V projections; the attention scale is folded into the Q projection.
    if (query is key) and (key is value):
        q2, k2, v2 = _fused_linear(
            xq, [params["wq"], params["wk"], params["wv"]],
            [params["bq"], params["bk"], params["bv"]],
            scales=(scale, 1.0, 1.0))
    else:
        (q2,) = _fused_linear(xq, [params["wq"]], [params["bq"]], scales=(scale,))
        if key is value:
            k2, v2 = _fused_linear(xk, [params["wk"], params["wv"]],
                                   [params["bk"], params["bv"]])
        else:
            (k2,) = _fused_linear(xk, [params["wk"]], [params["bk"]])
            (v2,) = _fused_linear(xv, [params["wv"]], [params["bv"]])

    # (B*S, d_model) -> (B, S, d_model): free reshape, no head transposes anywhere.
    q3 = q2.reshape(B, Sq, d_model)
    k3 = k2.reshape(B, Sk, d_model)
    v3 = v2.reshape(B, Sk, d_model)

    mask_i8 = None
    if (mask is not None) and (not causal):
        m = jnp.asarray(mask)
        if m.ndim == 2:
            m = m[None]
        if m.shape != (1, Sq, Sk) and m.shape != (B, Sq, Sk):
            m = jnp.broadcast_to(m, (B, Sq, Sk))
        mask_i8 = (m != 0).astype(jnp.int8)

    attn = _mha_attention(q3, k3, v3, h=h, mask=mask_i8, causal=causal)

    # Head merge is already folded (attn is (B, S, d_model)): output projection.
    (out2,) = _fused_linear(attn.reshape(B * Sq, d_model), [params["wo"]], [params["bo"]])
    return out2.reshape(B, Sq, d_model)


if __name__ == "__main__":
    # Small shapes consistent with the module: batch=2, seq=8, heads=4, d_model=32.
    B, S, h, d_model = 2, 8, 4, 32
    d_k = d_model // h

    key0 = jax.random.PRNGKey(0)
    keys = jax.random.split(key0, 12)

    def init_linear(kw, kb, d_in, d_out):
        w = jax.random.normal(kw, (d_in, d_out), jnp.float32) / math.sqrt(d_in)
        b = jax.random.normal(kb, (d_out,), jnp.float32) * 0.01
        return w, b

    wq, bq = init_linear(keys[0], keys[1], d_model, d_model)
    wk, bk = init_linear(keys[2], keys[3], d_model, d_model)
    wv, bv = init_linear(keys[4], keys[5], d_model, d_model)
    wo, bo = init_linear(keys[6], keys[7], d_model, d_model)
    params = dict(wq=wq, bq=bq, wk=wk, bk=bk, wv=wv, bv=bv, wo=wo, bo=bo)

    # Pure-JAX reference (dropout in eval mode == identity).
    def ref_mha(q_in, k_in, v_in, msk):
        def lin(x, w, b):
            return x @ w + b
        qh = lin(q_in, wq, bq).reshape(B, S, h, d_k).transpose(0, 2, 1, 3)
        kh = lin(k_in, wk, bk).reshape(B, S, h, d_k).transpose(0, 2, 1, 3)
        vh = lin(v_in, wv, bv).reshape(B, S, h, d_k).transpose(0, 2, 1, 3)
        scores = jnp.einsum("bhqd,bhkd->bhqk", qh, kh) / math.sqrt(d_k)
        if msk is not None:
            scores = jnp.where(msk[:, None, :, :] == 0, MASK_VALUE, scores)
        p = jax.nn.softmax(scores, axis=-1)
        o = jnp.einsum("bhqk,bhkd->bhqd", p, vh)
        o = o.transpose(0, 2, 1, 3).reshape(B, S, d_model)
        return lin(o, wo, bo)

    # Tolerance is set for the approx EUP reciprocal in the softmax finalize.
    def check(name, got, want, atol=5e-3, rtol=5e-3):
        assert got.shape == want.shape, (name, got.shape, want.shape)
        err = float(jnp.max(jnp.abs(got - want)))
        assert jnp.allclose(got, want, atol=atol, rtol=rtol), (
            f"{name}: mismatch vs reference, max abs err {err}")

    # 1) Self-attention with an explicit causal mask (typical module call):
    #    exercises the fused-QKV projection and the int8 explicit-mask kernel.
    x = jax.random.normal(keys[8], (B, S, d_model), jnp.float32)
    mask = jnp.tril(jnp.ones((S, S), jnp.int32))[None]            # (1, S, S)
    out = multi_headed_attention(x, x, x, params, h=h, mask=mask)
    out = jax.block_until_ready(out)
    check("masked self-attention", out,
          ref_mha(x, x, x, jnp.broadcast_to(mask, (B, S, S))))

    # 2) Causal fast path (mask generated in-kernel, fully-masked tiles skipped).
    out_causal = multi_headed_attention(x, x, x, params, h=h, causal=True)
    out_causal = jax.block_until_ready(out_causal)
    check("causal fast path", out_causal,
          ref_mha(x, x, x, jnp.broadcast_to(mask, (B, S, S))))

    # 3) Distinct q/k/v, no mask: exercises the separate-projection and
    #    maskless kernel variants.
    q_in = jax.random.normal(keys[9], (B, S, d_model), jnp.float32)
    k_in = jax.random.normal(keys[10], (B, S, d_model), jnp.float32)
    v_in = jax.random.normal(keys[11], (B, S, d_model), jnp.float32)
    out2 = multi_headed_attention(q_in, k_in, v_in, params, h=h)
    out2 = jax.block_until_ready(out2)
    check("maskless cross-attention", out2, ref_mha(q_in, k_in, v_in, None))

    print("KERNEL_OK")
</pallas_src>

<mosaic_0001>
module attributes {stable_mosaic.version = 11 : i64} {
  func.func @kernel(%arg0: i32, %arg1: i32, %arg2: memref<16x32xf32, #tpu.memory_space<vmem>>, %arg3: memref<32x32xf32, #tpu.memory_space<vmem>>, %arg4: memref<32x32xf32, #tpu.memory_space<vmem>>, %arg5: memref<32x32xf32, #tpu.memory_space<vmem>>, %arg6: memref<1x32xf32, #tpu.memory_space<vmem>>, %arg7: memref<1x32xf32, #tpu.memory_space<vmem>>, %arg8: memref<1x32xf32, #tpu.memory_space<vmem>>, %arg9: memref<16x32xf32, #tpu.memory_space<vmem>>, %arg10: memref<16x32xf32, #tpu.memory_space<vmem>>, %arg11: memref<16x32xf32, #tpu.memory_space<vmem>>) attributes {dimension_semantics = [#tpu.dimension_semantics<parallel>, #tpu.dimension_semantics<parallel>], iteration_bounds = array<i64: 1, 1>, scalar_prefetch = 0 : i64, scratch_operands = 0 : i64, tpu.core_type = #tpu.core_type<tc>, window_params = [{transform_indices = @transform_0, window_bounds = array<i64: 16, 32>}, {transform_indices = @transform_1, window_bounds = array<i64: 32, 32>}, {transform_indices = @transform_2, window_bounds = array<i64: 32, 32>}, {transform_indices = @transform_3, window_bounds = array<i64: 32, 32>}, {transform_indices = @transform_4, window_bounds = array<i64: 1, 32>}, {transform_indices = @transform_5, window_bounds = array<i64: 1, 32>}, {transform_indices = @transform_6, window_bounds = array<i64: 1, 32>}, {transform_indices = @transform_7, window_bounds = array<i64: 16, 32>}, {transform_indices = @transform_8, window_bounds = array<i64: 16, 32>}, {transform_indices = @transform_9, window_bounds = array<i64: 16, 32>}]} {
    %c0 = arith.constant 0 : index
    %c0_0 = arith.constant 0 : index
    %0 = vector.load %arg2[%c0, %c0_0] : memref<16x32xf32, #tpu.memory_space<vmem>>, vector<16x32xf32>
    %c0_1 = arith.constant 0 : index
    %c0_2 = arith.constant 0 : index
    %1 = vector.load %arg3[%c0_1, %c0_2] : memref<32x32xf32, #tpu.memory_space<vmem>>, vector<32x32xf32>
    %cst = arith.constant dense<0.000000e+00> : vector<16x32xf32>
    %2 = tpu.matmul %0, %1, %cst {dimension_numbers = #tpu.dot_dimension_numbers<[1], [0], [0], [1], [0, 0, 1, 1], [], []>} : vector<16x32xf32>, vector<32x32xf32>, vector<16x32xf32> -> vector<16x32xf32>
    %c0_3 = arith.constant 0 : index
    %c0_4 = arith.constant 0 : index
    %3 = vector.load %arg6[%c0_3, %c0_4] : memref<1x32xf32, #tpu.memory_space<vmem>>, vector<1x32xf32>
    %4 = vector.broadcast %3 : vector<1x32xf32> to vector<16x32xf32>
    %5 = arith.addf %2, %4 : vector<16x32xf32>
    %cst_5 = arith.constant 0.353553385 : f32
    %6 = vector.broadcast %cst_5 : f32 to vector<16x32xf32>
    %7 = arith.mulf %5, %6 : vector<16x32xf32>
    %c0_6 = arith.constant 0 : index
    %c0_7 = arith.constant 0 : index
    %8 = vector.load %arg9[%c0_6, %c0_7] : memref<16x32xf32, #tpu.memory_space<vmem>>, vector<16x32xf32>
    tpu.vector_store %arg9[%c0_6, %c0_7], %7 {strides = array<i32>} : memref<16x32xf32, #tpu.memory_space<vmem>>, vector<16x32xf32>,
    %c0_8 = arith.constant 0 : index
    %c0_9 = arith.constant 0 : index
    %9 = vector.load %arg4[%c0_8, %c0_9] : memref<32x32xf32, #tpu.memory_space<vmem>>, vector<32x32xf32>
    %cst_10 = arith.constant dense<0.000000e+00> : vector<16x32xf32>
    %10 = tpu.matmul %0, %9, %cst_10 {dimension_numbers = #tpu.dot_dimension_numbers<[1], [0], [0], [1], [0, 0, 1, 1], [], []>} : vector<16x32xf32>, vector<32x32xf32>, vector<16x32xf32> -> vector<16x32xf32>
    %c0_11 = arith.constant 0 : index
    %c0_12 = arith.constant 0 : index
    %11 = vector.load %arg7[%c0_11, %c0_12] : memref<1x32xf32, #tpu.memory_space<vmem>>, vector<1x32xf32>
    %12 = vector.broadcast %11 : vector<1x32xf32> to vector<16x32xf32>
    %13 = arith.addf %10, %12 : vector<16x32xf32>
    %c0_13 = arith.constant 0 : index
    %c0_14 = arith.constant 0 : index
    %14 = vector.load %arg10[%c0_13, %c0_14] : memref<16x32xf32, #tpu.memory_space<vmem>>, vector<16x32xf32>
    tpu.vector_store %arg10[%c0_13, %c0_14], %13 {strides = array<i32>} : memref<16x32xf32, #tpu.memory_space<vmem>>, vector<16x32xf32>,
    %c0_15 = arith.constant 0 : index
    %c0_16 = arith.constant 0 : index
    %15 = vector.load %arg5[%c0_15, %c0_16] : memref<32x32xf32, #tpu.memory_space<vmem>>, vector<32x32xf32>
    %cst_17 = arith.constant dense<0.000000e+00> : vector<16x32xf32>
    %16 = tpu.matmul %0, %15, %cst_17 {dimension_numbers = #tpu.dot_dimension_numbers<[1], [0], [0], [1], [0, 0, 1, 1], [], []>} : vector<16x32xf32>, vector<32x32xf32>, vector<16x32xf32> -> vector<16x32xf32>
    %c0_18 = arith.constant 0 : index
    %c0_19 = arith.constant 0 : index
    %17 = vector.load %arg8[%c0_18, %c0_19] : memref<1x32xf32, #tpu.memory_space<vmem>>, vector<1x32xf32>
    %18 = vector.broadcast %17 : vector<1x32xf32> to vector<16x32xf32>
    %19 = arith.addf %16, %18 : vector<16x32xf32>
    %c0_20 = arith.constant 0 : index
    %c0_21 = arith.constant 0 : index
    %20 = vector.load %arg11[%c0_20, %c0_21] : memref<16x32xf32, #tpu.memory_space<vmem>>, vector<16x32xf32>
    tpu.vector_store %arg11[%c0_20, %c0_21], %19 {strides = array<i32>} : memref<16x32xf32, #tpu.memory_space<vmem>>, vector<16x32xf32>,
    return
  }
  func.func @transform_0(%arg0: i32, %arg1: i32) -> (i32, i32) {
    %c0_i32 = arith.constant 0 : i32
    %c0_i32_0 = arith.constant 0 : i32
    return %arg0, %c0_i32 : i32, i32
  }
  func.func @transform_1(%arg0: i32, %arg1: i32) -> (i32, i32) {
    %c0_i32 = arith.constant 0 : i32
    %c0_i32_0 = arith.constant 0 : i32
    return %c0_i32, %arg1 : i32, i32
  }
  func.func @transform_2(%arg0: i32, %arg1: i32) -> (i32, i32) {
    %c0_i32 = arith.constant 0 : i32
    %c0_i32_0 = arith.constant 0 : i32
    return %c0_i32, %arg1 : i32, i32
  }
  func.func @transform_3(%arg0: i32, %arg1: i32) -> (i32, i32) {
    %c0_i32 = arith.constant 0 : i32
    %c0_i32_0 = arith.constant 0 : i32
    return %c0_i32, %arg1 : i32, i32
  }
  func.func @transform_4(%arg0: i32, %arg1: i32) -> (i32, i32) {
    %c0_i32 = arith.constant 0 : i32
    %c0_i32_0 = arith.constant 0 : i32
    return %c0_i32, %arg1 : i32, i32
  }
  func.func @transform_5(%arg0: i32, %arg1: i32) -> (i32, i32) {
    %c0_i32 = arith.constant 0 : i32
    %c0_i32_0 = arith.constant 0 : i32
    return %c0_i32, %arg1 : i32, i32
  }
  func.func @transform_6(%arg0: i32, %arg1: i32) -> (i32, i32) {
    %c0_i32 = arith.constant 0 : i32
    %c0_i32_0 = arith.constant 0 : i32
    return %c0_i32, %arg1 : i32, i32
  }
  func.func @transform_7(%arg0: i32, %arg1: i32) -> (i32, i32) {
    %c0_i32 = arith.constant 0 : i32
    return %arg0, %arg1 : i32, i32
  }
  func.func @transform_8(%arg0: i32, %arg1: i32) -> (i32, i32) {
    %c0_i32 = arith.constant 0 : i32
    return %arg0, %arg1 : i32, i32
  }
  func.func @transform_9(%arg0: i32, %arg1: i32) -> (i32, i32) {
    %c0_i32 = arith.constant 0 : i32
    return %arg0, %arg1 : i32, i32
  }
}

</mosaic_0001>

<llo_original>
// kernel: tpu_custom_call.1
$region0: #{tpu_custom_call.1}
  #allocation0 [shape = 'u32[]', space=smem, size = 0x4, offset = 0x4, fixed_abs, tag = 'smem constant byte address 0x4 - core index']
  #allocation1 [shape = 'u32[144,128]{1,0:T(1,128)}', space=vmem, size = 0x12000, scoped, tag = 'internal scratch']
  %s0 = inlined_call_operand.hbm [shape: f32[16,32], index: 0, kind: input, shape index: {}]
  %s1 = inlined_call_operand.hbm [shape: f32[32,32], index: 1, kind: input, shape index: {}]
  %s2 = inlined_call_operand.hbm [shape: f32[32,32], index: 2, kind: input, shape index: {}]
  %s3 = inlined_call_operand.hbm [shape: f32[32,32], index: 3, kind: input, shape index: {}]
  %s4 = inlined_call_operand.vmem [shape: f32[1,32], index: 4, kind: input, shape index: {}]
  %s5 = inlined_call_operand.vmem [shape: f32[1,32], index: 5, kind: input, shape index: {}]
  %s6 = inlined_call_operand.vmem [shape: f32[1,32], index: 6, kind: input, shape index: {}]
  %s7 = inlined_call_operand.hbm [shape: f32[16,32], index: 7, kind: output, shape index: {0}]
  %s8 = inlined_call_operand.hbm [shape: f32[16,32], index: 8, kind: output, shape index: {1}]
  %s9 = inlined_call_operand.hbm [shape: f32[16,32], index: 9, kind: output, shape index: {2}]
  %10 = xla_tuple %s7, %s8, %s9
  %s11 = sld [smem:[#allocation0]]
  $region70: #{tpu_custom_call.1} parent=0
    _
  %s13 = ssub.s32 1, %s11
  %s14 = scalar_select 0, %s13, %s11
  $region1: #{tpu_custom_call.1} parent=0
    #allocation2 [shape = 'u8[8192]{0}', space=vmem, size = 0x2000, scoped, tag = 'input window, operand 0, single buffered']
    #allocation3 [shape = 's32[1]{0}', space=sflag, size = 0x4, scoped, tag = 'scoped memory for tpu_custom_call.1']
    #allocation4 [shape = 's32[1]{0}', space=sflag, size = 0x4, scoped, tag = 'scoped memory for tpu_custom_call.1']
    #allocation5 [shape = 'u8[16384]{0}', space=vmem, size = 0x4000, scoped, tag = 'input window, operand 1, single buffered']
    #allocation6 [shape = 's32[1]{0}', space=sflag, size = 0x4, scoped, tag = 'scoped memory for tpu_custom_call.1']
    #allocation7 [shape = 'u8[16384]{0}', space=vmem, size = 0x4000, scoped, tag = 'input window, operand 2, single buffered']
    #allocation8 [shape = 'u8[16384]{0}', space=vmem, size = 0x4000, scoped, tag = 'input window, operand 3, single buffered']
    #allocation9 [shape = 's32[1]{0}', space=sflag, size = 0x4, scoped, tag = 'scoped memory for tpu_custom_call.1']
    #allocation10 [shape = 'u8[8192]{0}', space=vmem, size = 0x2000, scoped, tag = 'output window, operand 0, single buffered']
    #allocation11 [shape = 'u8[8192]{0}', space=vmem, size = 0x2000, scoped, tag = 'output window, operand 1, single buffered']
    #allocation12 [shape = 's32[1]{0}', space=sflag, size = 0x4, scoped, tag = 'scoped memory for tpu_custom_call.1']
    #allocation13 [shape = 'u8[8192]{0}', space=vmem, size = 0x2000, scoped, tag = 'output window, operand 2, single buffered']
    %15 = vsyncpa [#allocation3], 0
    %16 = vsyncpa [#allocation6], 0
    %17 = vsyncpa [#allocation9], 0
    %18 = vsyncpa [#allocation4], 0
    %19 = vsyncpa [#allocation12], 0
    // Predicated region
    $region2: #{tpu_custom_call.1} parent=1 // pred_check
      _
    $region3: #{tpu_custom_call.1} parent=1 // pred_check_branch
      %21 = sbr.rel (0) target = $region5
    $region4: #{tpu_custom_call.1} parent=1 // pred_region
      %s23 = ssub.s32 256, 256
      %24 = vsyncadd [#allocation3], %s23
      %s25 = sshll.u32 [#allocation2], 4
      %s26 = int_to_ptr.vmem [resolvable:$true] %s25
      %31 = dma.hbm_to_vmem [thread:$0]  %s0, 256, %s26, [#allocation3], 128, 128, 8
    $region5: #{tpu_custom_call.1} parent=1 // pred_fallthru
      _
    // Predicated region
    $region6: #{tpu_custom_call.1} parent=1 // pred_check
      _
    $region7: #{tpu_custom_call.1} parent=1 // pred_check_branch
      %33 = sbr.rel (0) target = $region9
    $region8: #{tpu_custom_call.1} parent=1 // pred_region
      %s35 = ssub.s32 512, 512
      %36 = vsyncadd [#allocation6], %s35
      %s37 = sshll.u32 [#allocation5], 4
      %s38 = int_to_ptr.vmem [resolvable:$true] %s37
      %43 = dma.hbm_to_vmem [thread:$0]  %s1, 512, %s38, [#allocation6], 128, 128, 8
    $region9: #{tpu_custom_call.1} parent=1 // pred_fallthru
      _
    // Predicated region
    $region10: #{tpu_custom_call.1} parent=1 // pred_check
      _
    $region11: #{tpu_custom_call.1} parent=1 // pred_check_branch
      %45 = sbr.rel (0) target = $region13
    $region12: #{tpu_custom_call.1} parent=1 // pred_region
      %s47 = ssub.s32 512, 512
      %48 = vsyncadd [#allocation6], %s47
      %s49 = sshll.u32 [#allocation7], 4
      %s50 = int_to_ptr.vmem [resolvable:$true] %s49
      %55 = dma.hbm_to_vmem [thread:$0]  %s2, 512, %s50, [#allocation6], 128, 128, 8
    $region13: #{tpu_custom_call.1} parent=1 // pred_fallthru
      _
    // Predicated region
    $region14: #{tpu_custom_call.1} parent=1 // pred_check
      _
    $region15: #{tpu_custom_call.1} parent=1 // pred_check_branch
      %57 = sbr.rel (0) target = $region17
    $region16: #{tpu_custom_call.1} parent=1 // pred_region
      %s59 = ssub.s32 512, 512
      %60 = vsyncadd [#allocation9], %s59
      %s61 = sshll.u32 [#allocation8], 4
      %s62 = int_to_ptr.vmem [resolvable:$true] %s61
      %67 = dma.hbm_to_vmem [thread:$0]  %s3, 512, %s62, [#allocation9], 128, 128, 8
    $region17: #{tpu_custom_call.1} parent=1 // pred_fallthru
      _
    // Predicated region
    $region18: #{tpu_custom_call.1} parent=1 // pred_check
      _
    $region19: #{tpu_custom_call.1} parent=1 // pred_check_branch
      %69 = sbr.rel (0) target = $region21
    $region20: #{tpu_custom_call.1} parent=1 // pred_region
      _
    $region21: #{tpu_custom_call.1} parent=1 // pred_fallthru
      _
    // Predicated region
    $region22: #{tpu_custom_call.1} parent=1 // pred_check
      _
    $region23: #{tpu_custom_call.1} parent=1 // pred_check_branch
      %71 = sbr.rel (0) target = $region25
    $region24: #{tpu_custom_call.1} parent=1 // pred_region
      _
    $region25: #{tpu_custom_call.1} parent=1 // pred_fallthru
      _
    // Predicated region
    $region26: #{tpu_custom_call.1} parent=1 // pred_check
      _
    $region27: #{tpu_custom_call.1} parent=1 // pred_check_branch
      %73 = sbr.rel (0) target = $region29
    $region28: #{tpu_custom_call.1} parent=1 // pred_region
      _
    $region29: #{tpu_custom_call.1} parent=1 // pred_fallthru
      _
    // Predicated region
    $region30: #{tpu_custom_call.1} parent=1 // pred_check
      _
    $region31: #{tpu_custom_call.1} parent=1 // pred_check_branch
      %75 = sbr.rel (0) target = $region33
    $region32: #{tpu_custom_call.1} parent=1 // pred_region
      %76 = dma.done [#allocation3], 256
    $region33: #{tpu_custom_call.1} parent=1 // pred_fallthru
      _
    // Predicated region
    $region34: #{tpu_custom_call.1} parent=1 // pred_check
      _
    $region35: #{tpu_custom_call.1} parent=1 // pred_check_branch
      %78 = sbr.rel (0) target = $region37
    $region36: #{tpu_custom_call.1} parent=1 // pred_region
      %79 = dma.done [#allocation6], 512
    $region37: #{tpu_custom_call.1} parent=1 // pred_fallthru
      _
    // Predicated region
    $region38: #{tpu_custom_call.1} parent=1 // pred_check
      _
    $region39: #{tpu_custom_call.1} parent=1 // pred_check_branch
      %81 = sbr.rel (0) target = $region41
    $region40: #{tpu_custom_call.1} parent=1 // pred_region
      %82 = dma.done [#allocation6], 512
    $region41: #{tpu_custom_call.1} parent=1 // pred_fallthru
      _
    // Predicated region
    $region42: #{tpu_custom_call.1} parent=1 // pred_check
      _
    $region43: #{tpu_custom_call.1} parent=1 // pred_check_branch
      %84 = sbr.rel (0) target = $region45
    $region44: #{tpu_custom_call.1} parent=1 // pred_region
      %85 = dma.done [#allocation9], 512
    $region45: #{tpu_custom_call.1} parent=1 // pred_fallthru
      _
    %v86 = vld [vmem:[#allocation2] sm:$0xff]
    %v87 = vld [vmem:[#allocation2 + $0x8] sm:$0xff]
    %v88 = vld [vmem:[#allocation5] sm:$0xff]
    %v89 = vld [vmem:[#allocation5 + $0x8] sm:$0xff]
    %v90 = vld [vmem:[#allocation5 + $0x10] sm:$0xff]
    %v91 = vld [vmem:[#allocation5 + $0x18] sm:$0xff]
    %v92 = vld [vmem:[%s4] sm:$0x1]
    %v94 = vlaneseq
    %v95 = vshrl.u32 %v94, 7
    %v96 = vsub.s32 0, %v95
    %v97 = vrot.slane %v92, %v96
    %vm99 = vcmask 261120
    %v101 = vsel %vm99, %v86, 0
    %v104 = vsel %vm99, %v87, 0
    %106 = vmatprep.subr.mxu0 0.0
    %107 = vmatpush1.msra.mxu0 %v88
    %108 = vmatprep.subr.mxu0 0.0
    %109 = vmatpush1.msra.mxu0 %v89
    %110 = vmatprep.subr.mxu0 0.0
    %111 = vmatpush1.msra.mxu0 %v90
    %112 = vmatprep.subr.mxu0 0.0
    %113 = vmatpush1.msra.mxu0 %v91
    %114 = vmatprep.subr.mxu0 0.0
    %115 = vmatpush1.msra.mxu0 0.0
    %116 = vmatprep.subr.mxu0 0.0
    %117 = vmatpush1.msra.mxu0 0.0
    %118 = vmatprep.subr.mxu0 0.0
    %119 = vmatpush1.msra.mxu0 0.0
    %120 = vmatprep.subr.mxu0 0.0
    %121 = vmatpush1.msra.mxu0 0.0
    %122 = vmatprep.subr.mxu0 0.0
    %123 = vmatpush1.msra.mxu0 0.0
    %124 = vmatprep.subr.mxu0 0.0
    %125 = vmatpush1.msra.mxu0 0.0
    %126 = vmatprep.subr.mxu0 0.0
    %127 = vmatpush1.msra.mxu0 0.0
    %128 = vmatprep.subr.mxu0 0.0
    %129 = vmatpush1.msra.mxu0 0.0
    %130 = vmatprep.subr.mxu0 0.0
    %131 = vmatpush1.msra.mxu0 0.0
    %132 = vmatprep.subr.mxu0 0.0
    %133 = vmatpush1.msra.mxu0 0.0
    %134 = vmatprep.subr.mxu0 0.0
    %135 = vmatpush1.msra.mxu0 0.0
    %136 = vmatprep.subr.mxu0 0.0
    %137 = vmatpush1.msra.mxu0 0.0
    %138 = vmatprep.subr.mxu0 0.0
    %139 = vmatpush1.msra.mxu0 0.0
    %140 = vmatprep.subr.mxu0 0.0
    %141 = vmatpush1.msra.mxu0 0.0
    %142 = vmatprep.subr.mxu0 0.0
    %143 = vmatpush1.msra.mxu0 0.0
    %144 = vmatprep.subr.mxu0 0.0
    %145 = vmatpush1.msra.mxu0 0.0
    %146 = vmatprep.subr.mxu0 0.0
    %147 = vmatpush1.msra.mxu0 0.0
    %148 = vmatprep.subr.mxu0 0.0
    %149 = vmatpush1.msra.mxu0 0.0
    %150 = vmatprep.subr.mxu0 0.0
    %151 = vmatpush1.msra.mxu0 0.0
    %152 = vmatprep.subr.mxu0 0.0
    %153 = vmatpush1.msra.mxu0 0.0
    %154 = vmatprep.subr.mxu0 0.0
    %155 = vmatpush1.msra.mxu0 0.0
    %156 = vmatprep.subr.mxu0 0.0
    %157 = vmatpush1.msra.mxu0 0.0
    %158 = vmatprep.subr.mxu0 0.0
    %159 = vmatpush1.msra.mxu0 0.0
    %160 = vmatprep.subr.mxu0 0.0
    %161 = vmatpush1.msra.mxu0 0.0
    %162 = vmatprep.subr.mxu0 0.0
    %163 = vmatpush1.msra.mxu0 0.0
    %164 = vmatprep.subr.mxu0 0.0
    %165 = vmatpush1.msra.mxu0 0.0
    %166 = vmatprep.subr.mxu0 0.0
    %167 = vmatpush1.msra.mxu0 0.0
    %168 = vmatprep.subr.mxu0 0.0
    %169 = vmatpush1.msra.mxu0 0.0
    %170 = vmatprep.mubr.f32.mxu0 0.0
    %171 = vmatmul.mubr.f32.gmra.mrb[0].mxu0 %v101
    %v172 = vpop.f32.mrb[0].mxu0
    %v173 = vadd.f32 %v97, %v172
    %v174 = vpop.f32.mrb[0].mxu0
    %175 = vmatprep.mubr.f32.mxu0 0.0
    %176 = vmatmul.mubr.f32.gmra.mrb[0].mxu0 %v104
    %v177 = vpop.f32.mrb[0].mxu0
    %v178 = vadd.f32 %v97, %v177
    %v179 = vpop.f32.mrb[0].mxu0
    %180 = vdwg.mxu0
    %v181 = vmul.f32 %v173, 0.35355338
    %v182 = vmul.f32 %v178, 0.35355338
    %183 = vst.msk [vmem:[#allocation10] sm:$0xff] %vm99, %v181
    %184 = vst.msk [vmem:[#allocation10 + $0x8] sm:$0xff] %vm99, %v182
    %v185 = vld [vmem:[#allocation7] sm:$0xff]
    %v186 = vld [vmem:[#allocation7 + $0x8] sm:$0xff]
    %v187 = vld [vmem:[#allocation7 + $0x10] sm:$0xff]
    %v188 = vld [vmem:[#allocation7 + $0x18] sm:$0xff]
    %v189 = vld [vmem:[%s5] sm:$0x1]
    %v191 = vlaneseq
    %v192 = vshrl.u32 %v191, 7
    %v193 = vsub.s32 0, %v192
    %v194 = vrot.slane %v189, %v193
    %196 = vmatprep.subr.mxu0 0.0
    %197 = vmatpush1.msra.mxu0 %v185
    %198 = vmatprep.subr.mxu0 0.0
    %199 = vmatpush1.msra.mxu0 %v186
    %200 = vmatprep.subr.mxu0 0.0
    %201 = vmatpush1.msra.mxu0 %v187
    %202 = vmatprep.subr.mxu0 0.0
    %203 = vmatpush1.msra.mxu0 %v188
    %204 = vmatprep.subr.mxu0 0.0
    %205 = vmatpush1.msra.mxu0 0.0
    %206 = vmatprep.subr.mxu0 0.0
    %207 = vmatpush1.msra.mxu0 0.0
    %208 = vmatprep.subr.mxu0 0.0
    %209 = vmatpush1.msra.mxu0 0.0
    %210 = vmatprep.subr.mxu0 0.0
    %211 = vmatpush1.msra.mxu0 0.0
    %212 = vmatprep.subr.mxu0 0.0
    %213 = vmatpush1.msra.mxu0 0.0
    %214 = vmatprep.subr.mxu0 0.0
    %215 = vmatpush1.msra.mxu0 0.0
    %216 = vmatprep.subr.mxu0 0.0
    %217 = vmatpush1.msra.mxu0 0.0
    %218 = vmatprep.subr.mxu0 0.0
    %219 = vmatpush1.msra.mxu0 0.0
    %220 = vmatprep.subr.mxu0 0.0
    %221 = vmatpush1.msra.mxu0 0.0
    %222 = vmatprep.subr.mxu0 0.0
    %223 = vmatpush1.msra.mxu0 0.0
    %224 = vmatprep.subr.mxu0 0.0
    %225 = vmatpush1.msra.mxu0 0.0
    %226 = vmatprep.subr.mxu0 0.0
    %227 = vmatpush1.msra.mxu0 0.0
    %228 = vmatprep.subr.mxu0 0.0
    %229 = vmatpush1.msra.mxu0 0.0
    %230 = vmatprep.subr.mxu0 0.0
    %231 = vmatpush1.msra.mxu0 0.0
    %232 = vmatprep.subr.mxu0 0.0
    %233 = vmatpush1.msra.mxu0 0.0
    %234 = vmatprep.subr.mxu0 0.0
    %235 = vmatpush1.msra.mxu0 0.0
    %236 = vmatprep.subr.mxu0 0.0
    %237 = vmatpush1.msra.mxu0 0.0
    %238 = vmatprep.subr.mxu0 0.0
    %239 = vmatpush1.msra.mxu0 0.0
    %240 = vmatprep.subr.mxu0 0.0
    %241 = vmatpush1.msra.mxu0 0.0
    %242 = vmatprep.subr.mxu0 0.0
    %243 = vmatpush1.msra.mxu0 0.0
    %244 = vmatprep.subr.mxu0 0.0
    %245 = vmatpush1.msra.mxu0 0.0
    %246 = vmatprep.subr.mxu0 0.0
    %247 = vmatpush1.msra.mxu0 0.0
    %248 = vmatprep.subr.mxu0 0.0
    %249 = vmatpush1.msra.mxu0 0.0
    %250 = vmatprep.subr.mxu0 0.0
    %251 = vmatpush1.msra.mxu0 0.0
    %252 = vmatprep.subr.mxu0 0.0
    %253 = vmatpush1.msra.mxu0 0.0
    %254 = vmatprep.subr.mxu0 0.0
    %255 = vmatpush1.msra.mxu0 0.0
    %256 = vmatprep.subr.mxu0 0.0
    %257 = vmatpush1.msra.mxu0 0.0
    %258 = vmatprep.subr.mxu0 0.0
    %259 = vmatpush1.msra.mxu0 0.0
    %260 = vmatprep.mubr.f32.mxu0 0.0
    %261 = vmatmul.mubr.f32.gmra.mrb[0].mxu0 %v101
    %v262 = vpop.f32.mrb[0].mxu0
    %v263 = vadd.f32 %v194, %v262
    %v264 = vpop.f32.mrb[0].mxu0
    %265 = vmatprep.mubr.f32.mxu0 0.0
    %266 = vmatmul.mubr.f32.gmra.mrb[0].mxu0 %v104
    %v267 = vpop.f32.mrb[0].mxu0
    %v268 = vadd.f32 %v194, %v267
    %v269 = vpop.f32.mrb[0].mxu0
    %270 = vdwg.mxu0
    %271 = vst.msk [vmem:[#allocation11] sm:$0xff] %vm99, %v263
    %272 = vst.msk [vmem:[#allocation11 + $0x8] sm:$0xff] %vm99, %v268
    %v273 = vld [vmem:[#allocation8] sm:$0xff]
    %v274 = vld [vmem:[#allocation8 + $0x8] sm:$0xff]
    %v275 = vld [vmem:[#allocation8 + $0x10] sm:$0xff]
    %v276 = vld [vmem:[#allocation8 + $0x18] sm:$0xff]
    %v277 = vld [vmem:[%s6] sm:$0x1]
    %v279 = vlaneseq
    %v280 = vshrl.u32 %v279, 7
    %v281 = vsub.s32 0, %v280
    %v282 = vrot.slane %v277, %v281
    %284 = vmatprep.subr.mxu0 0.0
    %285 = vmatpush1.msra.mxu0 %v273
    %286 = vmatprep.subr.mxu0 0.0
    %287 = vmatpush1.msra.mxu0 %v274
    %288 = vmatprep.subr.mxu0 0.0
    %289 = vmatpush1.msra.mxu0 %v275
    %290 = vmatprep.subr.mxu0 0.0
    %291 = vmatpush1.msra.mxu0 %v276
    %292 = vmatprep.subr.mxu0 0.0
    %293 = vmatpush1.msra.mxu0 0.0
    %294 = vmatprep.subr.mxu0 0.0
    %295 = vmatpush1.msra.mxu0 0.0
    %296 = vmatprep.subr.mxu0 0.0
    %297 = vmatpush1.msra.mxu0 0.0
    %298 = vmatprep.subr.mxu0 0.0
    %299 = vmatpush1.msra.mxu0 0.0
    %300 = vmatprep.subr.mxu0 0.0
    %301 = vmatpush1.msra.mxu0 0.0
    %302 = vmatprep.subr.mxu0 0.0
    %303 = vmatpush1.msra.mxu0 0.0
    %304 = vmatprep.subr.mxu0 0.0
    %305 = vmatpush1.msra.mxu0 0.0
    %306 = vmatprep.subr.mxu0 0.0
    %307 = vmatpush1.msra.mxu0 0.0
    %308 = vmatprep.subr.mxu0 0.0
    %309 = vmatpush1.msra.mxu0 0.0
    %310 = vmatprep.subr.mxu0 0.0
    %311 = vmatpush1.msra.mxu0 0.0
    %312 = vmatprep.subr.mxu0 0.0
    %313 = vmatpush1.msra.mxu0 0.0
    %314 = vmatprep.subr.mxu0 0.0
    %315 = vmatpush1.msra.mxu0 0.0
    %316 = vmatprep.subr.mxu0 0.0
    %317 = vmatpush1.msra.mxu0 0.0
    %318 = vmatprep.subr.mxu0 0.0
    %319 = vmatpush1.msra.mxu0 0.0
    %320 = vmatprep.subr.mxu0 0.0
    %321 = vmatpush1.msra.mxu0 0.0
    %322 = vmatprep.subr.mxu0 0.0
    %323 = vmatpush1.msra.mxu0 0.0
    %324 = vmatprep.subr.mxu0 0.0
    %325 = vmatpush1.msra.mxu0 0.0
    %326 = vmatprep.subr.mxu0 0.0
    %327 = vmatpush1.msra.mxu0 0.0
    %328 = vmatprep.subr.mxu0 0.0
    %329 = vmatpush1.msra.mxu0 0.0
    %330 = vmatprep.subr.mxu0 0.0
    %331 = vmatpush1.msra.mxu0 0.0
    %332 = vmatprep.subr.mxu0 0.0
    %333 = vmatpush1.msra.mxu0 0.0
    %334 = vmatprep.subr.mxu0 0.0
    %335 = vmatpush1.msra.mxu0 0.0
    %336 = vmatprep.subr.mxu0 0.0
    %337 = vmatpush1.msra.mxu0 0.0
    %338 = vmatprep.subr.mxu0 0.0
    %339 = vmatpush1.msra.mxu0 0.0
    %340 = vmatprep.subr.mxu0 0.0
    %341 = vmatpush1.msra.mxu0 0.0
    %342 = vmatprep.subr.mxu0 0.0
    %343 = vmatpush1.msra.mxu0 0.0
    %344 = vmatprep.subr.mxu0 0.0
    %345 = vmatpush1.msra.mxu0 0.0
    %346 = vmatprep.subr.mxu0 0.0
    %347 = vmatpush1.msra.mxu0 0.0
    %348 = vmatprep.mubr.f32.mxu0 0.0
    %349 = vmatmul.mubr.f32.gmra.mrb[0].mxu0 %v101
    %v350 = vpop.f32.mrb[0].mxu0
    %v351 = vadd.f32 %v282, %v350
    %v352 = vpop.f32.mrb[0].mxu0
    %353 = vmatprep.mubr.f32.mxu0 0.0
    %354 = vmatmul.mubr.f32.gmra.mrb[0].mxu0 %v104
    %v355 = vpop.f32.mrb[0].mxu0
    %v356 = vadd.f32 %v282, %v355
    %v357 = vpop.f32.mrb[0].mxu0
    %358 = vdwg.mxu0
    %359 = vst.msk [vmem:[#allocation13] sm:$0xff] %vm99, %v351
    %360 = vst.msk [vmem:[#allocation13 + $0x8] sm:$0xff] %vm99, %v356
    // Predicated region
    $region46: #{tpu_custom_call.1} parent=1 // pred_check
      _
    $region47: #{tpu_custom_call.1} parent=1 // pred_check_branch
      %362 = sbr.rel (0) target = $region49
    $region48: #{tpu_custom_call.1} parent=1 // pred_region
      %s364 = ssub.s32 256, 256
      %365 = vsyncadd [#allocation4], %s364
      %s366 = sshll.u32 [#allocation10], 4
      %s367 = int_to_ptr.vmem [resolvable:$true] %s366
      %372 = dma.vmem_to_hbm [thread:$0]  %s367, 256, %s7, [#allocation4], 128, 128, 8
    $region49: #{tpu_custom_call.1} parent=1 // pred_fallthru
      _
    // Predicated region
    $region50: #{tpu_custom_call.1} parent=1 // pred_check
      _
    $region51: #{tpu_custom_call.1} parent=1 // pred_check_branch
      %374 = sbr.rel (0) target = $region53
    $region52: #{tpu_custom_call.1} parent=1 // pred_region
      %s376 = ssub.s32 256, 256
      %377 = vsyncadd [#allocation12], %s376
      %s378 = sshll.u32 [#allocation11], 4
      %s379 = int_to_ptr.vmem [resolvable:$true] %s378
      %384 = dma.vmem_to_hbm [thread:$0]  %s379, 256, %s8, [#allocation12], 128, 128, 8
    $region53: #{tpu_custom_call.1} parent=1 // pred_fallthru
      _
    // Predicated region
    $region54: #{tpu_custom_call.1} parent=1 // pred_check
      _
    $region55: #{tpu_custom_call.1} parent=1 // pred_check_branch
      %386 = sbr.rel (0) target = $region57
    $region56: #{tpu_custom_call.1} parent=1 // pred_region
      %s388 = ssub.s32 256, 256
      %389 = vsyncadd [#allocation12], %s388
      %s390 = sshll.u32 [#allocation13], 4
      %s391 = int_to_ptr.vmem [resolvable:$true] %s390
      %396 = dma.vmem_to_hbm [thread:$0]  %s391, 256, %s9, [#allocation12], 128, 128, 8
    $region57: #{tpu_custom_call.1} parent=1 // pred_fallthru
      _
    // Predicated region
    $region58: #{tpu_custom_call.1} parent=1 // pred_check
      _
    $region59: #{tpu_custom_call.1} parent=1 // pred_check_branch
      %398 = sbr.rel (0) target = $region61
    $region60: #{tpu_custom_call.1} parent=1 // pred_region
      %399 = dma.done [#allocation4], 256
    $region61: #{tpu_custom_call.1} parent=1 // pred_fallthru
      _
    // Predicated region
    $region62: #{tpu_custom_call.1} parent=1 // pred_check
      _
    $region63: #{tpu_custom_call.1} parent=1 // pred_check_branch
      %401 = sbr.rel (0) target = $region65
    $region64: #{tpu_custom_call.1} parent=1 // pred_region
      %402 = dma.done [#allocation12], 256
    $region65: #{tpu_custom_call.1} parent=1 // pred_fallthru
      _
    // Predicated region
    $region66: #{tpu_custom_call.1} parent=1 // pred_check
      _
    $region67: #{tpu_custom_call.1} parent=1 // pred_check_branch
      %404 = sbr.rel (0) target = $region69
    $region68: #{tpu_custom_call.1} parent=1 // pred_region
      %405 = dma.done [#allocation12], 256
    $region69: #{tpu_custom_call.1} parent=1 // pred_fallthru
      _
    %406 = vsyncpa [#allocation3], 1
    %407 = vsyncpa [#allocation6], 1
    %408 = vsyncpa [#allocation9], 1
    %409 = vsyncpa [#allocation4], 1
    %410 = vsyncpa [#allocation12], 1

</llo_original>
